<compile_context>
chip_gen: v7x
topology: tpu7x:2x2x1
jax: 0.10.0
libtpu: 0.0.40
codegen_flags: <defaults>
</compile_context>

<pallas_src>
import functools

import jax
import jax.numpy as jnp
from jax.experimental import pallas as pl
from jax.experimental.pallas import tpu as pltpu


def _round_up(x, m):
    return ((x + m - 1) // m) * m


def _vmem_capacity_bytes():
    """Best-effort physical VMEM size; conservative (v7x per-TC) fallback."""
    try:
        info = pltpu.get_tpu_info()
        cap = getattr(info, "vmem_capacity_bytes", None)
        if cap:
            return int(cap)
    except Exception:
        pass
    return 64 * 2**20


def _largest_dividing_tile(n_p, cap):
    """Largest multiple of 128 that divides n_p and is <= cap (>= 128)."""
    best = 128
    t = 128
    top = min(n_p, cap)
    while t <= top:
        if n_p % t == 0:
            best = t
        t += 128
    return best


def _pick_tiles(n_p):
    tk = _largest_dividing_tile(n_p, 2048)      # reduction-axis tile
    tm_cap = 512
    if n_p >= 256:
        tm_cap = min(tm_cap, n_p // 2)          # grid_i >= 2 -> both v7x cores busy
    tm = _largest_dividing_tile(n_p, tm_cap)
    return tm, tk


def _graphconv_kernel(sup_ref, f_ref, b_ref, o_ref, *, tk, apply_relu, sup_resident):
    k = pl.program_id(1)

    @pl.when(k == 0)
    def _init():
        o_ref[...] = jnp.zeros_like(o_ref)

    if sup_resident:
        start = pl.multiple_of(k * tk, 128)
        sup = sup_ref[pl.ds(start, tk), :]
    else:
        sup = sup_ref[...]

    # acc (f32, resident output block) += filter[i_tile, k_tile] @ support[k_tile]
    o_ref[...] += jnp.dot(f_ref[...], sup, preferred_element_type=jnp.float32)

    # Epilogue (bias + ReLU) only on the last k step, in f32.
    @pl.when(k == pl.num_programs(1) - 1)
    def _finalize():
        out = o_ref[...] + b_ref[...]
        if apply_relu:
            out = jnp.maximum(out, 0.0)
        o_ref[...] = out


def graph_conv(x, w, filt_padded, b, *, n, apply_relu, compute_dtype):
    """One GraphConv layer: filter @ (x @ w) + b, optional fused ReLU.

    `filt_padded` is the [N_p, N_p] zero-padded (optionally downcast) filter,
    prepared ONCE for all layers in gcn_forward.
    """
    f_out = w.shape[1]
    f_out_p = _round_up(f_out, 128)
    n_p = filt_padded.shape[0]
    cdt = jnp.dtype(compute_dtype)
    itm = cdt.itemsize
    out_dtype = x.dtype

    # support = x @ W once per layer (small [N, F_out] matmul; plain XLA dot).
    # Hoisted out of the kernel so the k-reduction does no MXU recompute and
    # x is never re-read per row tile.
    sup = jnp.dot(x, w, preferred_element_type=jnp.float32)
    sup_p = jnp.zeros((n_p, f_out_p), cdt).at[:n, :f_out].set(sup.astype(cdt))
    bp = jnp.zeros((1, f_out_p), jnp.float32).at[:, :f_out].set(
        jnp.asarray(b, jnp.float32).reshape(1, -1))

    tm, tk = _pick_tiles(n_p)
    grid_i, grid_k = n_p // tm, n_p // tk

    vmem_cap = _vmem_capacity_bytes()
    # Keep `support` fully VMEM-resident (constant index_map -> fetched once)
    # unless it would eat too much VMEM; then stream (tk, F_out_p) slices.
    sup_resident = 2 * n_p * f_out_p * itm <= vmem_cap // 4
    if sup_resident:
        sup_spec = pl.BlockSpec((n_p, f_out_p), lambda i, k: (0, 0))
        sup_vmem = 2 * n_p * f_out_p * itm
        sup_hbm = n_p * f_out_p * itm
    else:
        sup_spec = pl.BlockSpec((tk, f_out_p), lambda i, k: (k, 0))
        sup_vmem = 2 * tk * f_out_p * itm
        sup_hbm = grid_i * n_p * f_out_p * itm

    # VMEM working set: double-buffered filter tile + support + resident output
    # tile + bias; 2x headroom for compiler scratch.
    est = 2 * tm * tk * itm + sup_vmem + 2 * tm * f_out_p * 4 + 2 * 8 * f_out_p * 4
    vmem_limit = int(min(max(2 * est, 32 * 2**20), int(0.7 * vmem_cap)))

    # Advisory cost estimate for XLA's scheduler.
    flops = 2 * n_p * n_p * f_out_p
    bytes_accessed = (n_p * n_p * itm          # filter read once
                      + sup_hbm                # support read(s)
                      + n_p * f_out_p * 4      # f32 output write
                      + f_out_p * 4)           # bias

    kernel = functools.partial(_graphconv_kernel, tk=tk, apply_relu=apply_relu,
                               sup_resident=sup_resident)
    out_p = pl.pallas_call(
        kernel,
        out_shape=jax.ShapeDtypeStruct((n_p, f_out_p), jnp.float32),
        grid_spec=pltpu.PrefetchScalarGridSpec(
            num_scalar_prefetch=0,
            grid=(grid_i, grid_k),
            in_specs=[
                sup_spec,                                         # support
                pl.BlockSpec((tm, tk), lambda i, k: (i, k)),      # filter tile
                pl.BlockSpec((1, f_out_p), lambda i, k: (0, 0)),  # bias
            ],
            out_specs=pl.BlockSpec((tm, f_out_p), lambda i, k: (i, 0)),
        ),
        compiler_params=pltpu.CompilerParams(
            dimension_semantics=("parallel", "arbitrary"),
            vmem_limit_bytes=vmem_limit,
        ),
        cost_estimate=pl.CostEstimate(
            flops=flops, transcendentals=0, bytes_accessed=bytes_accessed),
    )(sup_p, filt_padded, bp)
    return out_p[:n, :f_out].astype(out_dtype)


def init_gcn_params(key, nlayers, n_input, n_hid, n_output, enable_bias=True,
                    dtype=jnp.float32):
    """Deterministic glorot-uniform init matching the PyTorch module's shapes."""
    if nlayers >= 2:
        dims = [(n_input, n_hid)] + [(n_hid, n_hid)] * (nlayers - 2) + [(n_hid, n_output)]
    else:
        dims = [(n_input, n_output)]
    params = []
    for (fin, fout) in dims:
        key, kw = jax.random.split(key)
        limit = (6.0 / (fin + fout)) ** 0.5
        w = jax.random.uniform(kw, (fin, fout), dtype, minval=-limit, maxval=limit)
        b = jnp.zeros((1, fout), dtype)  # bias (zeros whether enable_bias or not)
        params.append((w, b))
    return params


def gcn_forward(params, x, filt, *, compute_dtype=None):
    """(K-1) x [GraphConv + ReLU + dropout(identity, eval)] then a final GraphConv."""
    cdt = jnp.dtype(compute_dtype) if compute_dtype is not None else jnp.dtype(x.dtype)
    n = x.shape[0]
    n_p = _round_up(n, 128)
    # Pad + cast the O(N^2) filter ONCE for all K layers; skip when conforming.
    if n_p == n and filt.dtype == cdt:
        fp = filt
    else:
        fp = jnp.zeros((n_p, n_p), cdt).at[:n, :n].set(filt.astype(cdt))

    k_layers = len(params)
    h = x
    for k, (w, b) in enumerate(params):
        is_last = (k == k_layers - 1)
        h = graph_conv(h, w, fp, b, n=n, apply_relu=not is_last, compute_dtype=cdt)
        # dropout: identity in eval mode
    # TODO(synk): keep the hidden state VMEM-resident across layers (in-kernel
    # emit_pipeline over filter row tiles) to skip the per-layer h writeback.
    return h


if __name__ == "__main__":
    def build_inputs(key, n_nodes, n_input):
        kx, kf = jax.random.split(key)
        x = jax.random.normal(kx, (n_nodes, n_input), jnp.float32)
        a = (jax.random.uniform(kf, (n_nodes, n_nodes)) > 0.7).astype(jnp.float32)
        a = jnp.maximum(a, a.T) + jnp.eye(n_nodes, dtype=jnp.float32)   # A + I
        deg = jnp.sum(a, axis=1)
        d_inv_sqrt = 1.0 / jnp.sqrt(deg)
        return x, a * d_inv_sqrt[:, None] * d_inv_sqrt[None, :]         # D^-1/2(A+I)D^-1/2

    def reference(params, x, filt):
        ref = x
        for k, (w, b) in enumerate(params):
            ref = filt @ (ref @ w) + b
            if k != len(params) - 1:
                ref = jnp.maximum(ref, 0.0)
        return ref

    key = jax.random.PRNGKey(0)
    key, k_small, k_big, kp1, kp2 = jax.random.split(key, 5)
    n_input, n_hid, n_output = 8, 32, 4

    # Case 1: tiny graph (16 nodes -> padded 128, single-tile grid), 2 layers.
    x1, f1 = build_inputs(k_small, 16, n_input)
    params1 = init_gcn_params(kp1, 2, n_input, n_hid, n_output, enable_bias=True)
    out1 = jax.block_until_ready(gcn_forward(params1, x1, f1))
    ref1 = reference(params1, x1, f1)
    assert out1.shape == (16, n_output)
    assert jnp.allclose(out1, ref1, atol=1e-4, rtol=1e-4)

    # Case 2: larger graph (600 nodes -> padded 640, grid (5, 1)), 3 layers.
    # Exercises the (parallel, arbitrary) tiled row axis + resident accumulator.
    x2, f2 = build_inputs(k_big, 600, n_input)
    params2 = init_gcn_params(kp2, 3, n_input, n_hid, n_output, enable_bias=True)
    out2 = jax.block_until_ready(gcn_forward(params2, x2, f2))
    ref2 = reference(params2, x2, f2)
    assert out2.shape == (600, n_output)
    assert jnp.allclose(out2, ref2, atol=1e-3, rtol=1e-3)

    # Case 3: bf16 compute path (halves HBM traffic for the [N,N] filter reads,
    # f32 accumulation in the kernel) -- loose tolerance vs the f32 reference.
    out2_bf16 = jax.block_until_ready(
        gcn_forward(params2, x2, f2, compute_dtype=jnp.bfloat16))
    assert out2_bf16.shape == (600, n_output)
    assert jnp.all(jnp.isfinite(out2_bf16))
    assert jnp.allclose(out2_bf16, ref2, atol=0.3, rtol=0.3)

    print("KERNEL_OK")
</pallas_src>

<mosaic_0001>
module attributes {stable_mosaic.version = 11 : i64} {
  func.func @_graphconv_kernel(%arg0: i32, %arg1: i32, %arg2: memref<128x128xf32, #tpu.memory_space<vmem>>, %arg3: memref<128x128xf32, #tpu.memory_space<vmem>>, %arg4: memref<1x128xf32, #tpu.memory_space<vmem>>, %arg5: memref<128x128xf32, #tpu.memory_space<vmem>>) attributes {dimension_semantics = [#tpu.dimension_semantics<parallel>, #tpu.dimension_semantics<arbitrary>], iteration_bounds = array<i64: 1, 1>, scalar_prefetch = 0 : i64, scratch_operands = 0 : i64, tpu.core_type = #tpu.core_type<tc>, window_params = [{pipeline_mode = #tpu.pipeline_mode<synchronous>, transform_indices = @transform_0, window_bounds = array<i64: 128, 128>}, {transform_indices = @transform_1, window_bounds = array<i64: 128, 128>}, {pipeline_mode = #tpu.pipeline_mode<synchronous>, transform_indices = @transform_2, window_bounds = array<i64: 1, 128>}, {transform_indices = @transform_3, window_bounds = array<i64: 128, 128>}]} {
    %c0_i32 = arith.constant 0 : i32
    %0 = arith.cmpi eq, %arg1, %c0_i32 : i32
    %1 = arith.extui %0 : i1 to i32
    %c0_i32_0 = arith.constant 0 : i32
    %2 = arith.cmpi ne, %1, %c0_i32_0 : i32
    scf.if %2 {
      %cst_9 = arith.constant 0.000000e+00 : f32
      %15 = vector.broadcast %cst_9 : f32 to vector<128x128xf32>
      %c0_10 = arith.constant 0 : index
      %c0_11 = arith.constant 0 : index
      %16 = vector.load %arg5[%c0_10, %c0_11] : memref<128x128xf32, #tpu.memory_space<vmem>>, vector<128x128xf32>
      tpu.vector_store %arg5[%c0_10, %c0_11], %15 {strides = array<i32>} : memref<128x128xf32, #tpu.memory_space<vmem>>, vector<128x128xf32>,
    } else {
    }
    %c128_i32 = arith.constant 128 : i32
    %3 = arith.muli %arg1, %c128_i32 : i32
    %4 = tpu.assume_multiple %3, 128 : i32
    %5 = arith.index_cast %4 : i32 to index
    %c0 = arith.constant 0 : index
    %6 = vector.load %arg2[%5, %c0] : memref<128x128xf32, #tpu.memory_space<vmem>>, vector<128x128xf32>
    %c0_1 = arith.constant 0 : index
    %c0_2 = arith.constant 0 : index
    %7 = vector.load %arg5[%c0_1, %c0_2] : memref<128x128xf32, #tpu.memory_space<vmem>>, vector<128x128xf32>
    %c0_3 = arith.constant 0 : index
    %c0_4 = arith.constant 0 : index
    %8 = vector.load %arg3[%c0_3, %c0_4] : memref<128x128xf32, #tpu.memory_space<vmem>>, vector<128x128xf32>
    %cst = arith.constant dense<0.000000e+00> : vector<128x128xf32>
    %9 = tpu.matmul %8, %6, %cst {dimension_numbers = #tpu.dot_dimension_numbers<[1], [0], [0], [1], [0, 0, 1, 1], [], []>} : vector<128x128xf32>, vector<128x128xf32>, vector<128x128xf32> -> vector<128x128xf32>
    %10 = arith.addf %7, %9 : vector<128x128xf32>
    %c0_5 = arith.constant 0 : index
    %c0_6 = arith.constant 0 : index
    %11 = vector.load %arg5[%c0_5, %c0_6] : memref<128x128xf32, #tpu.memory_space<vmem>>, vector<128x128xf32>
    tpu.vector_store %arg5[%c0_5, %c0_6], %10 {strides = array<i32>} : memref<128x128xf32, #tpu.memory_space<vmem>>, vector<128x128xf32>,
    %c0_i32_7 = arith.constant 0 : i32
    %12 = arith.cmpi eq, %arg1, %c0_i32_7 : i32
    %13 = arith.extui %12 : i1 to i32
    %c0_i32_8 = arith.constant 0 : i32
    %14 = arith.cmpi ne, %13, %c0_i32_8 : i32
    scf.if %14 {
      %c0_9 = arith.constant 0 : index
      %c0_10 = arith.constant 0 : index
      %15 = vector.load %arg5[%c0_9, %c0_10] : memref<128x128xf32, #tpu.memory_space<vmem>>, vector<128x128xf32>
      %c0_11 = arith.constant 0 : index
      %c0_12 = arith.constant 0 : index
      %16 = vector.load %arg4[%c0_11, %c0_12] : memref<1x128xf32, #tpu.memory_space<vmem>>, vector<1x128xf32>
      %17 = vector.broadcast %16 : vector<1x128xf32> to vector<128x128xf32>
      %18 = arith.addf %15, %17 : vector<128x128xf32>
      %cst_13 = arith.constant 0.000000e+00 : f32
      %19 = vector.broadcast %cst_13 : f32 to vector<128x128xf32>
      %20 = arith.maximumf %18, %19 : vector<128x128xf32>
      %c0_14 = arith.constant 0 : index
      %c0_15 = arith.constant 0 : index
      %21 = vector.load %arg5[%c0_14, %c0_15] : memref<128x128xf32, #tpu.memory_space<vmem>>, vector<128x128xf32>
      tpu.vector_store %arg5[%c0_14, %c0_15], %20 {strides = array<i32>} : memref<128x128xf32, #tpu.memory_space<vmem>>, vector<128x128xf32>,
    } else {
    }
    return
  }
  func.func @transform_0(%arg0: i32, %arg1: i32) -> (i32, i32) {
    %c0_i32 = arith.constant 0 : i32
    %c0_i32_0 = arith.constant 0 : i32
    %c0_i32_1 = arith.constant 0 : i32
    return %c0_i32, %c0_i32_0 : i32, i32
  }
  func.func @transform_1(%arg0: i32, %arg1: i32) -> (i32, i32) {
    %c0_i32 = arith.constant 0 : i32
    return %arg0, %arg1 : i32, i32
  }
  func.func @transform_2(%arg0: i32, %arg1: i32) -> (i32, i32) {
    %c0_i32 = arith.constant 0 : i32
    %c0_i32_0 = arith.constant 0 : i32
    %c0_i32_1 = arith.constant 0 : i32
    return %c0_i32, %c0_i32_0 : i32, i32
  }
  func.func @transform_3(%arg0: i32, %arg1: i32) -> (i32, i32) {
    %c0_i32 = arith.constant 0 : i32
    %c0_i32_0 = arith.constant 0 : i32
    return %arg0, %c0_i32 : i32, i32
  }
}

</mosaic_0001>

<llo_original>
// kernel: tpu_custom_call.1
$region0: #{tpu_custom_call.1}
  #allocation0 [shape = 'u32[]', space=smem, size = 0x4, offset = 0x4, fixed_abs, tag = 'smem constant byte address 0x4 - core index']
  #allocation1 [shape = 'u32[144,128]{1,0:T(1,128)}', space=vmem, size = 0x12000, scoped, tag = 'internal scratch']
  %s0 = inlined_call_operand.hbm [shape: f32[128,128], index: 0, kind: input, shape index: {}]
  %s1 = inlined_call_operand.hbm [shape: f32[128,128], index: 1, kind: input, shape index: {}]
  %s2 = inlined_call_operand.vmem [shape: f32[1,128], index: 2, kind: input, shape index: {}]
  %s3 = inlined_call_operand.hbm [shape: f32[128,128], index: 3, kind: output, shape index: {}]
  %s4 = sld [smem:[#allocation0]]
  $region38: #{tpu_custom_call.1} parent=0
    _
  %s6 = ssub.s32 1, %s4
  %s7 = scalar_select 0, %s6, %s4
  $region1: #{tpu_custom_call.1} parent=0
    #allocation2 [shape = 'u8[65536]{0}', space=vmem, size = 0x10000, scoped, tag = 'input window, operand 0, single buffered']
    #allocation3 [shape = 's32[1]{0}', space=sflag, size = 0x4, scoped, tag = 'scoped memory for tpu_custom_call.1']
    #allocation4 [shape = 's32[1]{0}', space=sflag, size = 0x4, scoped, tag = 'scoped memory for tpu_custom_call.1']
    #allocation5 [shape = 'u8[65536]{0}', space=vmem, size = 0x10000, scoped, tag = 'input window, operand 1, single buffered']
    #allocation6 [shape = 's32[1]{0}', space=sflag, size = 0x4, scoped, tag = 'scoped memory for tpu_custom_call.1']
    #allocation7 [shape = 'u8[65536]{0}', space=vmem, size = 0x10000, scoped, tag = 'output window, operand 0, single buffered']
    %8 = vsyncpa [#allocation3], 0
    %9 = vsyncpa [#allocation6], 0
    %10 = vsyncpa [#allocation4], 0
    // Predicated region
    $region2: #{tpu_custom_call.1} parent=1 // pred_check
      _
    $region3: #{tpu_custom_call.1} parent=1 // pred_check_branch
      %12 = sbr.rel (0) target = $region5
    $region4: #{tpu_custom_call.1} parent=1 // pred_region
      %s14 = ssub.s32 2048, 2048
      %15 = vsyncadd [#allocation3], %s14
      %s16 = sshll.u32 [#allocation2], 4
      %s17 = int_to_ptr.vmem [resolvable:$true] %s16
      %22 = dma.hbm_to_vmem [thread:$0]  %s0, 2048, %s17, [#allocation3], 128, 128, 8
    $region5: #{tpu_custom_call.1} parent=1 // pred_fallthru
      _
    // Predicated region
    $region6: #{tpu_custom_call.1} parent=1 // pred_check
      _
    $region7: #{tpu_custom_call.1} parent=1 // pred_check_branch
      %24 = sbr.rel (0) target = $region9
    $region8: #{tpu_custom_call.1} parent=1 // pred_region
      %s26 = ssub.s32 2048, 2048
      %27 = vsyncadd [#allocation6], %s26
      %s28 = sshll.u32 [#allocation5], 4
      %s29 = int_to_ptr.vmem [resolvable:$true] %s28
      %34 = dma.hbm_to_vmem [thread:$0]  %s1, 2048, %s29, [#allocation6], 128, 128, 8
    $region9: #{tpu_custom_call.1} parent=1 // pred_fallthru
      _
    // Predicated region
    $region10: #{tpu_custom_call.1} parent=1 // pred_check
      _
    $region11: #{tpu_custom_call.1} parent=1 // pred_check_branch
      %36 = sbr.rel (0) target = $region13
    $region12: #{tpu_custom_call.1} parent=1 // pred_region
      _
    $region13: #{tpu_custom_call.1} parent=1 // pred_fallthru
      _
    // Predicated region
    $region14: #{tpu_custom_call.1} parent=1 // pred_check
      _
    $region15: #{tpu_custom_call.1} parent=1 // pred_check_branch
      %38 = sbr.rel (0) target = $region17
    $region16: #{tpu_custom_call.1} parent=1 // pred_region
      %39 = dma.done [#allocation3], 2048
    $region17: #{tpu_custom_call.1} parent=1 // pred_fallthru
      _
    // Predicated region
    $region18: #{tpu_custom_call.1} parent=1 // pred_check
      _
    $region19: #{tpu_custom_call.1} parent=1 // pred_check_branch
      %41 = sbr.rel (0) target = $region21
    $region20: #{tpu_custom_call.1} parent=1 // pred_region
      %42 = dma.done [#allocation6], 2048
    $region21: #{tpu_custom_call.1} parent=1 // pred_fallthru
      _
    %p43 = scmp.eq.s32.totalorder 0, 0
    // Predicated region
    $region22: #{tpu_custom_call.1} parent=1 // pred_check
      %p44 = pneg %p43
    $region23: #{tpu_custom_call.1} parent=1 // pred_check_branch
      %46 = sbr.rel (%p44) target = $region25
    $region24: #{tpu_custom_call.1} parent=1 // pred_region
      %47 = vst [vmem:[#allocation7] sm:$0xff] 0.0
      %48 = vst [vmem:[#allocation7 + $0x8] sm:$0xff] 0.0
      %49 = vst [vmem:[#allocation7 + $0x10] sm:$0xff] 0.0
      %50 = vst [vmem:[#allocation7 + $0x18] sm:$0xff] 0.0
      %51 = vst [vmem:[#allocation7 + $0x20] sm:$0xff] 0.0
      %52 = vst [vmem:[#allocation7 + $0x28] sm:$0xff] 0.0
      %53 = vst [vmem:[#allocation7 + $0x30] sm:$0xff] 0.0
      %54 = vst [vmem:[#allocation7 + $0x38] sm:$0xff] 0.0
      %55 = vst [vmem:[#allocation7 + $0x40] sm:$0xff] 0.0
      %56 = vst [vmem:[#allocation7 + $0x48] sm:$0xff] 0.0
      %57 = vst [vmem:[#allocation7 + $0x50] sm:$0xff] 0.0
      %58 = vst [vmem:[#allocation7 + $0x58] sm:$0xff] 0.0
      %59 = vst [vmem:[#allocation7 + $0x60] sm:$0xff] 0.0
      %60 = vst [vmem:[#allocation7 + $0x68] sm:$0xff] 0.0
      %61 = vst [vmem:[#allocation7 + $0x70] sm:$0xff] 0.0
      %62 = vst [vmem:[#allocation7 + $0x78] sm:$0xff] 0.0
    $region25: #{tpu_custom_call.1} parent=1 // pred_fallthru
      _
    %s63 = smul.u32 0, 128
    %s64 = scalar_lea.vmem [#allocation2], %s63
    %v65 = vld [vmem:[%s64] sm:$0xff]
    %v66 = vld [vmem:[%s64 + $0x8] sm:$0xff]
    %v67 = vld [vmem:[%s64 + $0x10] sm:$0xff]
    %v68 = vld [vmem:[%s64 + $0x18] sm:$0xff]
    %v69 = vld [vmem:[%s64 + $0x20] sm:$0xff]
    %v70 = vld [vmem:[%s64 + $0x28] sm:$0xff]
    %v71 = vld [vmem:[%s64 + $0x30] sm:$0xff]
    %v72 = vld [vmem:[%s64 + $0x38] sm:$0xff]
    %v73 = vld [vmem:[%s64 + $0x40] sm:$0xff]
    %v74 = vld [vmem:[%s64 + $0x48] sm:$0xff]
    %v75 = vld [vmem:[%s64 + $0x50] sm:$0xff]
    %v76 = vld [vmem:[%s64 + $0x58] sm:$0xff]
    %v77 = vld [vmem:[%s64 + $0x60] sm:$0xff]
    %v78 = vld [vmem:[%s64 + $0x68] sm:$0xff]
    %v79 = vld [vmem:[%s64 + $0x70] sm:$0xff]
    %v80 = vld [vmem:[%s64 + $0x78] sm:$0xff]
    %v81 = vld [vmem:[#allocation7] sm:$0xff]
    %v82 = vld [vmem:[#allocation7 + $0x8] sm:$0xff]
    %v83 = vld [vmem:[#allocation7 + $0x10] sm:$0xff]
    %v84 = vld [vmem:[#allocation7 + $0x18] sm:$0xff]
    %v85 = vld [vmem:[#allocation7 + $0x20] sm:$0xff]
    %v86 = vld [vmem:[#allocation7 + $0x28] sm:$0xff]
    %v87 = vld [vmem:[#allocation7 + $0x30] sm:$0xff]
    %v88 = vld [vmem:[#allocation7 + $0x38] sm:$0xff]
    %v89 = vld [vmem:[#allocation7 + $0x40] sm:$0xff]
    %v90 = vld [vmem:[#allocation7 + $0x48] sm:$0xff]
    %v91 = vld [vmem:[#allocation7 + $0x50] sm:$0xff]
    %v92 = vld [vmem:[#allocation7 + $0x58] sm:$0xff]
    %v93 = vld [vmem:[#allocation7 + $0x60] sm:$0xff]
    %v94 = vld [vmem:[#allocation7 + $0x68] sm:$0xff]
    %v95 = vld [vmem:[#allocation7 + $0x70] sm:$0xff]
    %v96 = vld [vmem:[#allocation7 + $0x78] sm:$0xff]
    %v97 = vld [vmem:[#allocation5] sm:$0xff]
    %v98 = vld [vmem:[#allocation5 + $0x8] sm:$0xff]
    %v99 = vld [vmem:[#allocation5 + $0x10] sm:$0xff]
    %v100 = vld [vmem:[#allocation5 + $0x18] sm:$0xff]
    %v101 = vld [vmem:[#allocation5 + $0x20] sm:$0xff]
    %v102 = vld [vmem:[#allocation5 + $0x28] sm:$0xff]
    %v103 = vld [vmem:[#allocation5 + $0x30] sm:$0xff]
    %v104 = vld [vmem:[#allocation5 + $0x38] sm:$0xff]
    %v105 = vld [vmem:[#allocation5 + $0x40] sm:$0xff]
    %v106 = vld [vmem:[#allocation5 + $0x48] sm:$0xff]
    %v107 = vld [vmem:[#allocation5 + $0x50] sm:$0xff]
    %v108 = vld [vmem:[#allocation5 + $0x58] sm:$0xff]
    %v109 = vld [vmem:[#allocation5 + $0x60] sm:$0xff]
    %v110 = vld [vmem:[#allocation5 + $0x68] sm:$0xff]
    %v111 = vld [vmem:[#allocation5 + $0x70] sm:$0xff]
    %v112 = vld [vmem:[#allocation5 + $0x78] sm:$0xff]
    %113 = vmatprep.subr.mxu0 0.0
    %114 = vmatpush1.msra.mxu0 %v65
    %115 = vmatprep.subr.mxu0 0.0
    %116 = vmatpush1.msra.mxu0 %v66
    %117 = vmatprep.subr.mxu0 0.0
    %118 = vmatpush1.msra.mxu0 %v67
    %119 = vmatprep.subr.mxu0 0.0
    %120 = vmatpush1.msra.mxu0 %v68
    %121 = vmatprep.subr.mxu0 0.0
    %122 = vmatpush1.msra.mxu0 %v69
    %123 = vmatprep.subr.mxu0 0.0
    %124 = vmatpush1.msra.mxu0 %v70
    %125 = vmatprep.subr.mxu0 0.0
    %126 = vmatpush1.msra.mxu0 %v71
    %127 = vmatprep.subr.mxu0 0.0
    %128 = vmatpush1.msra.mxu0 %v72
    %129 = vmatprep.subr.mxu0 0.0
    %130 = vmatpush1.msra.mxu0 %v73
    %131 = vmatprep.subr.mxu0 0.0
    %132 = vmatpush1.msra.mxu0 %v74
    %133 = vmatprep.subr.mxu0 0.0
    %134 = vmatpush1.msra.mxu0 %v75
    %135 = vmatprep.subr.mxu0 0.0
    %136 = vmatpush1.msra.mxu0 %v76
    %137 = vmatprep.subr.mxu0 0.0
    %138 = vmatpush1.msra.mxu0 %v77
    %139 = vmatprep.subr.mxu0 0.0
    %140 = vmatpush1.msra.mxu0 %v78
    %141 = vmatprep.subr.mxu0 0.0
    %142 = vmatpush1.msra.mxu0 %v79
    %143 = vmatprep.subr.mxu0 0.0
    %144 = vmatpush1.msra.mxu0 %v80
    %145 = vmatprep.subr.mxu0 0.0
    %146 = vmatpush1.msra.mxu0 0.0
    %147 = vmatprep.subr.mxu0 0.0
    %148 = vmatpush1.msra.mxu0 0.0
    %149 = vmatprep.subr.mxu0 0.0
    %150 = vmatpush1.msra.mxu0 0.0
    %151 = vmatprep.subr.mxu0 0.0
    %152 = vmatpush1.msra.mxu0 0.0
    %153 = vmatprep.subr.mxu0 0.0
    %154 = vmatpush1.msra.mxu0 0.0
    %155 = vmatprep.subr.mxu0 0.0
    %156 = vmatpush1.msra.mxu0 0.0
    %157 = vmatprep.subr.mxu0 0.0
    %158 = vmatpush1.msra.mxu0 0.0
    %159 = vmatprep.subr.mxu0 0.0
    %160 = vmatpush1.msra.mxu0 0.0
    %161 = vmatprep.subr.mxu0 0.0
    %162 = vmatpush1.msra.mxu0 0.0
    %163 = vmatprep.subr.mxu0 0.0
    %164 = vmatpush1.msra.mxu0 0.0
    %165 = vmatprep.subr.mxu0 0.0
    %166 = vmatpush1.msra.mxu0 0.0
    %167 = vmatprep.subr.mxu0 0.0
    %168 = vmatpush1.msra.mxu0 0.0
    %169 = vmatprep.subr.mxu0 0.0
    %170 = vmatpush1.msra.mxu0 0.0
    %171 = vmatprep.subr.mxu0 0.0
    %172 = vmatpush1.msra.mxu0 0.0
    %173 = vmatprep.subr.mxu0 0.0
    %174 = vmatpush1.msra.mxu0 0.0
    %175 = vmatprep.subr.mxu0 0.0
    %176 = vmatpush1.msra.mxu0 0.0
    %177 = vmatprep.mubr.f32.mxu0 0.0
    %178 = vmatmul.mubr.f32.gmra.mrb[0].mxu0 %v97
    %v179 = vpop.f32.mrb[0].mxu0
    %v180 = vadd.f32 0.0, %v179
    %v181 = vpop.f32.mrb[0].mxu0
    %182 = vmatprep.mubr.f32.mxu0 0.0
    %183 = vmatmul.mubr.f32.gmra.mrb[0].mxu0 %v98
    %v184 = vpop.f32.mrb[0].mxu0
    %v185 = vadd.f32 0.0, %v184
    %v186 = vpop.f32.mrb[0].mxu0
    %187 = vmatprep.mubr.f32.mxu0 0.0
    %188 = vmatmul.mubr.f32.gmra.mrb[0].mxu0 %v99
    %v189 = vpop.f32.mrb[0].mxu0
    %v190 = vadd.f32 0.0, %v189
    %v191 = vpop.f32.mrb[0].mxu0
    %192 = vmatprep.mubr.f32.mxu0 0.0
    %193 = vmatmul.mubr.f32.gmra.mrb[0].mxu0 %v100
    %v194 = vpop.f32.mrb[0].mxu0
    %v195 = vadd.f32 0.0, %v194
    %v196 = vpop.f32.mrb[0].mxu0
    %197 = vmatprep.mubr.f32.mxu0 0.0
    %198 = vmatmul.mubr.f32.gmra.mrb[0].mxu0 %v101
    %v199 = vpop.f32.mrb[0].mxu0
    %v200 = vadd.f32 0.0, %v199
    %v201 = vpop.f32.mrb[0].mxu0
    %202 = vmatprep.mubr.f32.mxu0 0.0
    %203 = vmatmul.mubr.f32.gmra.mrb[0].mxu0 %v102
    %v204 = vpop.f32.mrb[0].mxu0
    %v205 = vadd.f32 0.0, %v204
    %v206 = vpop.f32.mrb[0].mxu0
    %207 = vmatprep.mubr.f32.mxu0 0.0
    %208 = vmatmul.mubr.f32.gmra.mrb[0].mxu0 %v103
    %v209 = vpop.f32.mrb[0].mxu0
    %v210 = vadd.f32 0.0, %v209
    %v211 = vpop.f32.mrb[0].mxu0
    %212 = vmatprep.mubr.f32.mxu0 0.0
    %213 = vmatmul.mubr.f32.gmra.mrb[0].mxu0 %v104
    %v214 = vpop.f32.mrb[0].mxu0
    %v215 = vadd.f32 0.0, %v214
    %v216 = vpop.f32.mrb[0].mxu0
    %217 = vmatprep.mubr.f32.mxu0 0.0
    %218 = vmatmul.mubr.f32.gmra.mrb[0].mxu0 %v105
    %v219 = vpop.f32.mrb[0].mxu0
    %v220 = vadd.f32 0.0, %v219
    %v221 = vpop.f32.mrb[0].mxu0
    %222 = vmatprep.mubr.f32.mxu0 0.0
    %223 = vmatmul.mubr.f32.gmra.mrb[0].mxu0 %v106
    %v224 = vpop.f32.mrb[0].mxu0
    %v225 = vadd.f32 0.0, %v224
    %v226 = vpop.f32.mrb[0].mxu0
    %227 = vmatprep.mubr.f32.mxu0 0.0
    %228 = vmatmul.mubr.f32.gmra.mrb[0].mxu0 %v107
    %v229 = vpop.f32.mrb[0].mxu0
    %v230 = vadd.f32 0.0, %v229
    %v231 = vpop.f32.mrb[0].mxu0
    %232 = vmatprep.mubr.f32.mxu0 0.0
    %233 = vmatmul.mubr.f32.gmra.mrb[0].mxu0 %v108
    %v234 = vpop.f32.mrb[0].mxu0
    %v235 = vadd.f32 0.0, %v234
    %v236 = vpop.f32.mrb[0].mxu0
    %237 = vmatprep.mubr.f32.mxu0 0.0
    %238 = vmatmul.mubr.f32.gmra.mrb[0].mxu0 %v109
    %v239 = vpop.f32.mrb[0].mxu0
    %v240 = vadd.f32 0.0, %v239
    %v241 = vpop.f32.mrb[0].mxu0
    %242 = vmatprep.mubr.f32.mxu0 0.0
    %243 = vmatmul.mubr.f32.gmra.mrb[0].mxu0 %v110
    %v244 = vpop.f32.mrb[0].mxu0
    %v245 = vadd.f32 0.0, %v244
    %v246 = vpop.f32.mrb[0].mxu0
    %247 = vmatprep.mubr.f32.mxu0 0.0
    %248 = vmatmul.mubr.f32.gmra.mrb[0].mxu0 %v111
    %v249 = vpop.f32.mrb[0].mxu0
    %v250 = vadd.f32 0.0, %v249
    %v251 = vpop.f32.mrb[0].mxu0
    %252 = vmatprep.mubr.f32.mxu0 0.0
    %253 = vmatmul.mubr.f32.gmra.mrb[0].mxu0 %v112
    %v254 = vpop.f32.mrb[0].mxu0
    %v255 = vadd.f32 0.0, %v254
    %v256 = vpop.f32.mrb[0].mxu0
    %257 = vdwg.mxu0
    %v258 = vadd.f32 %v81, %v180
    %v259 = vadd.f32 %v82, %v185
    %v260 = vadd.f32 %v83, %v190
    %v261 = vadd.f32 %v84, %v195
    %v262 = vadd.f32 %v85, %v200
    %v263 = vadd.f32 %v86, %v205
    %v264 = vadd.f32 %v87, %v210
    %v265 = vadd.f32 %v88, %v215
    %v266 = vadd.f32 %v89, %v220
    %v267 = vadd.f32 %v90, %v225
    %v268 = vadd.f32 %v91, %v230
    %v269 = vadd.f32 %v92, %v235
    %v270 = vadd.f32 %v93, %v240
    %v271 = vadd.f32 %v94, %v245
    %v272 = vadd.f32 %v95, %v250
    %v273 = vadd.f32 %v96, %v255
    %274 = vst [vmem:[#allocation7] sm:$0xff] %v258
    %275 = vst [vmem:[#allocation7 + $0x8] sm:$0xff] %v259
    %276 = vst [vmem:[#allocation7 + $0x10] sm:$0xff] %v260
    %277 = vst [vmem:[#allocation7 + $0x18] sm:$0xff] %v261
    %278 = vst [vmem:[#allocation7 + $0x20] sm:$0xff] %v262
    %279 = vst [vmem:[#allocation7 + $0x28] sm:$0xff] %v263
    %280 = vst [vmem:[#allocation7 + $0x30] sm:$0xff] %v264
    %281 = vst [vmem:[#allocation7 + $0x38] sm:$0xff] %v265
    %282 = vst [vmem:[#allocation7 + $0x40] sm:$0xff] %v266
    %283 = vst [vmem:[#allocation7 + $0x48] sm:$0xff] %v267
    %284 = vst [vmem:[#allocation7 + $0x50] sm:$0xff] %v268
    %285 = vst [vmem:[#allocation7 + $0x58] sm:$0xff] %v269
    %286 = vst [vmem:[#allocation7 + $0x60] sm:$0xff] %v270
    %287 = vst [vmem:[#allocation7 + $0x68] sm:$0xff] %v271
    %288 = vst [vmem:[#allocation7 + $0x70] sm:$0xff] %v272
    %289 = vst [vmem:[#allocation7 + $0x78] sm:$0xff] %v273
    // Predicated region
    $region26: #{tpu_custom_call.1} parent=1 // pred_check
      %p290 = pneg %p43
    $region27: #{tpu_custom_call.1} parent=1 // pred_check_branch
      %292 = sbr.rel (%p290) target = $region29
    $region28: #{tpu_custom_call.1} parent=1 // pred_region
      %v293 = vld [vmem:[#allocation7] sm:$0xff]
      %v294 = vld [vmem:[#allocation7 + $0x8] sm:$0xff]
      %v295 = vld [vmem:[#allocation7 + $0x10] sm:$0xff]
      %v296 = vld [vmem:[#allocation7 + $0x18] sm:$0xff]
      %v297 = vld [vmem:[#allocation7 + $0x20] sm:$0xff]
      %v298 = vld [vmem:[#allocation7 + $0x28] sm:$0xff]
      %v299 = vld [vmem:[#allocation7 + $0x30] sm:$0xff]
      %v300 = vld [vmem:[#allocation7 + $0x38] sm:$0xff]
      %v301 = vld [vmem:[#allocation7 + $0x40] sm:$0xff]
      %v302 = vld [vmem:[#allocation7 + $0x48] sm:$0xff]
      %v303 = vld [vmem:[#allocation7 + $0x50] sm:$0xff]
      %v304 = vld [vmem:[#allocation7 + $0x58] sm:$0xff]
      %v305 = vld [vmem:[#allocation7 + $0x60] sm:$0xff]
      %v306 = vld [vmem:[#allocation7 + $0x68] sm:$0xff]
      %v307 = vld [vmem:[#allocation7 + $0x70] sm:$0xff]
      %v308 = vld [vmem:[#allocation7 + $0x78] sm:$0xff]
      %v309 = vld [vmem:[%s2] sm:$0x1]
      %v311 = vlaneseq
      %v312 = vshrl.u32 %v311, 7
      %v313 = vsub.s32 0, %v312
      %v314 = vrot.slane %v309, %v313
      %v316 = vadd.f32 %v293, %v314
      %v317 = vadd.f32 %v294, %v314
      %v318 = vadd.f32 %v295, %v314
      %v319 = vadd.f32 %v296, %v314
      %v320 = vadd.f32 %v297, %v314
      %v321 = vadd.f32 %v298, %v314
      %v322 = vadd.f32 %v299, %v314
      %v323 = vadd.f32 %v300, %v314
      %v324 = vadd.f32 %v301, %v314
      %v325 = vadd.f32 %v302, %v314
      %v326 = vadd.f32 %v303, %v314
      %v327 = vadd.f32 %v304, %v314
      %v328 = vadd.f32 %v305, %v314
      %v329 = vadd.f32 %v306, %v314
      %v330 = vadd.f32 %v307, %v314
      %v331 = vadd.f32 %v308, %v314
      %v332 = vmax.f32 %v316, 0.0
      %v333 = vmax.f32 %v317, 0.0
      %v334 = vmax.f32 %v318, 0.0
      %v335 = vmax.f32 %v319, 0.0
      %v336 = vmax.f32 %v320, 0.0
      %v337 = vmax.f32 %v321, 0.0
      %v338 = vmax.f32 %v322, 0.0
      %v339 = vmax.f32 %v323, 0.0
      %v340 = vmax.f32 %v324, 0.0
      %v341 = vmax.f32 %v325, 0.0
      %v342 = vmax.f32 %v326, 0.0
      %v343 = vmax.f32 %v327, 0.0
      %v344 = vmax.f32 %v328, 0.0
      %v345 = vmax.f32 %v329, 0.0
      %v346 = vmax.f32 %v330, 0.0
      %v347 = vmax.f32 %v331, 0.0
      %348 = vst [vmem:[#allocation7] sm:$0xff] %v332
      %349 = vst [vmem:[#allocation7 + $0x8] sm:$0xff] %v333
      %350 = vst [vmem:[#allocation7 + $0x10] sm:$0xff] %v334
      %351 = vst [vmem:[#allocation7 + $0x18] sm:$0xff] %v335
      %352 = vst [vmem:[#allocation7 + $0x20] sm:$0xff] %v336
      %353 = vst [vmem:[#allocation7 + $0x28] sm:$0xff] %v337
      %354 = vst [vmem:[#allocation7 + $0x30] sm:$0xff] %v338
      %355 = vst [vmem:[#allocation7 + $0x38] sm:$0xff] %v339
      %356 = vst [vmem:[#allocation7 + $0x40] sm:$0xff] %v340
      %357 = vst [vmem:[#allocation7 + $0x48] sm:$0xff] %v341
      %358 = vst [vmem:[#allocation7 + $0x50] sm:$0xff] %v342
      %359 = vst [vmem:[#allocation7 + $0x58] sm:$0xff] %v343
      %360 = vst [vmem:[#allocation7 + $0x60] sm:$0xff] %v344
      %361 = vst [vmem:[#allocation7 + $0x68] sm:$0xff] %v345
      %362 = vst [vmem:[#allocation7 + $0x70] sm:$0xff] %v346
      %363 = vst [vmem:[#allocation7 + $0x78] sm:$0xff] %v347
    $region29: #{tpu_custom_call.1} parent=1 // pred_fallthru
      _
    // Predicated region
    $region30: #{tpu_custom_call.1} parent=1 // pred_check
      _
    $region31: #{tpu_custom_call.1} parent=1 // pred_check_branch
      %365 = sbr.rel (0) target = $region33
    $region32: #{tpu_custom_call.1} parent=1 // pred_region
      %s367 = ssub.s32 2048, 2048
      %368 = vsyncadd [#allocation4], %s367
      %s369 = sshll.u32 [#allocation7], 4
      %s370 = int_to_ptr.vmem [resolvable:$true] %s369
      %375 = dma.vmem_to_hbm [thread:$0]  %s370, 2048, %s3, [#allocation4], 128, 128, 8
    $region33: #{tpu_custom_call.1} parent=1 // pred_fallthru
      _
    // Predicated region
    $region34: #{tpu_custom_call.1} parent=1 // pred_check
      _
    $region35: #{tpu_custom_call.1} parent=1 // pred_check_branch
      %377 = sbr.rel (0) target = $region37
    $region36: #{tpu_custom_call.1} parent=1 // pred_region
      %378 = dma.done [#allocation4], 2048
    $region37: #{tpu_custom_call.1} parent=1 // pred_fallthru
      _
    %379 = vsyncpa [#allocation3], 1
    %380 = vsyncpa [#allocation6], 1
    %381 = vsyncpa [#allocation4], 1

</llo_original>
